<compile_context>
chip_gen: v7x
topology: tpu7x:2x2x1
jax: 0.10.0
libtpu: 0.0.40
codegen_flags: <defaults>
</compile_context>

<pallas_src>
import jax
import jax.numpy as jnp
from jax.experimental import pallas as pl
from jax.experimental.pallas import tpu as pltpu


def mlp_kernel(x_ref, w1_ref, b1_ref, w2_ref, b2_ref, w3_ref, b3_ref, out_ref):
    x = x_ref[...]
    # linear1 + sigmoid (MXU matmul, f32 accumulation; sigmoid in f32 on EUP)
    h1 = jnp.dot(x, w1_ref[...], preferred_element_type=jnp.float32)
    h1 = jax.nn.sigmoid(h1 + b1_ref[...].astype(jnp.float32))
    # linear2 + sigmoid
    h2 = jnp.dot(h1.astype(w2_ref.dtype), w2_ref[...],
                 preferred_element_type=jnp.float32)
    h2 = jax.nn.sigmoid(h2 + b2_ref[...].astype(jnp.float32))
    # linear3 (no activation)
    y = jnp.dot(h2.astype(w3_ref.dtype), w3_ref[...],
                preferred_element_type=jnp.float32)
    out_ref[...] = (y + b3_ref[...].astype(jnp.float32)).astype(out_ref.dtype)


def _round_up(n, m):
    return ((n + m - 1) // m) * m


def net_forward(x, w1, b1, w2, b2, w3, b3, *, block_b=1024, compute_dtype=None):
    """Forward pass of Net. Weights are [in, out]; biases are [1, out]."""
    B, D_in = x.shape
    H1 = w1.shape[1]
    H2 = w2.shape[1]
    D_out = w3.shape[1]
    out_dtype = x.dtype  # captured before any reduced-precision cast

    # Zero-pad hidden dims to lane multiples (128) so h1/h2 are lane-dense.
    # Zero rows in w2/w3 make this numerically exact: the sigmoid(0)=0.5 pad
    # columns of h1/h2 are multiplied by zero rows in the next weight.
    H1p = _round_up(H1, 128)
    H2p = _round_up(H2, 128)
    if H1p != H1:
        w1 = jnp.pad(w1, ((0, 0), (0, H1p - H1)))
        b1 = jnp.pad(b1, ((0, 0), (0, H1p - H1)))
        w2 = jnp.pad(w2, ((0, H1p - H1), (0, 0)))
    if H2p != H2:
        w2 = jnp.pad(w2, ((0, 0), (0, H2p - H2)))
        b2 = jnp.pad(b2, ((0, 0), (0, H2p - H2)))
        w3 = jnp.pad(w3, ((0, H2p - H2), (0, 0)))

    # Optional reduced-precision inputs/weights (f32 accumulation kept inside;
    # biases stay f32, added post-accumulation).  Useful on v5e/v6e/v7x alike.
    if compute_dtype is not None:
        x = x.astype(compute_dtype)
        w1 = w1.astype(compute_dtype)
        w2 = w2.astype(compute_dtype)
        w3 = w3.astype(compute_dtype)

    # Batch tile: multiple of 8 sublanes, large enough to amortize per-step
    # overhead, but split into >=2 grid steps when B > 8 so v7x's two
    # TensorCores both get work.  No wrapper pad of x: the last block may be
    # partial; its out-of-range rows are discarded on writeback.
    TB = min(block_b, _round_up(pl.cdiv(B, 2), 8))
    grid = (pl.cdiv(B, TB),)

    def resident(arr):
        # Constant block index: DMA'd once and kept resident in VMEM for the
        # whole batch grid; single buffer (double-buffering a never-changing
        # block only burns VMEM).
        return pl.BlockSpec(arr.shape, lambda i: (0, 0),
                            pipeline_mode=pl.Buffered(1))

    # Explicit VMEM budget (with headroom), capped below v7x's 64 MiB physical.
    in_itemsize = jnp.dtype(x.dtype).itemsize
    out_itemsize = jnp.dtype(out_dtype).itemsize
    est = ((D_in * H1p + H1p * H2p + H2p * D_out) * in_itemsize  # weights (1x)
           + (H1p + H2p + D_out) * 4                             # biases (f32)
           + 2 * TB * D_in * in_itemsize                         # x (2 bufs)
           + 2 * TB * D_out * out_itemsize                       # out (2 bufs)
           + TB * (H1p + H2p + D_out) * 4)                       # f32 temps
    vmem_limit = int(min(max(2 * est, 16 << 20), 64 << 20))

    # TODO(synk): if scaled-up weights become HBM-BW-bound on v5e/v6e, store
    # them int8 with per-tensor scales (dequant after the f32 accumulation);
    # not portable to v7x (no integer MXU there -- use fp8 instead).
    return pl.pallas_call(
        mlp_kernel,
        out_shape=jax.ShapeDtypeStruct((B, D_out), out_dtype),
        grid=grid,
        in_specs=[
            pl.BlockSpec((TB, D_in), lambda i: (i, 0)),   # x: tiled over batch
            resident(w1), resident(b1),
            resident(w2), resident(b2),
            resident(w3), resident(b3),
        ],
        out_specs=pl.BlockSpec((TB, D_out), lambda i: (i, 0)),
        compiler_params=pltpu.CompilerParams(
            dimension_semantics=("parallel",),   # shard batch across v7x TCs
            vmem_limit_bytes=vmem_limit),
    )(x, w1, b1, w2, b2, w3, b3)


def init_linear(key, fan_in, fan_out, dtype=jnp.float32):
    # PyTorch nn.Linear default init: U(-1/sqrt(fan_in), 1/sqrt(fan_in))
    kw, kb = jax.random.split(key)
    bound = 1.0 / (fan_in ** 0.5)
    # stored as [in, out] (transposed vs. PyTorch's [out, in])
    w = jax.random.uniform(kw, (fan_in, fan_out), dtype, minval=-bound, maxval=bound)
    b = jax.random.uniform(kb, (1, fan_out), dtype, minval=-bound, maxval=bound)
    return w, b


def reference_forward(x, w1, b1, w2, b2, w3, b3):
    h1 = jax.nn.sigmoid(x @ w1 + b1)
    h2 = jax.nn.sigmoid(h1 @ w2 + b2)
    return h2 @ w3 + b3


if __name__ == "__main__":
    # Small shapes consistent with Net(D_in, H1, H2, D_out)
    D_in, H1, H2, D_out = 32, 64, 32, 16

    key = jax.random.PRNGKey(0)
    kx, k1, k2, k3 = jax.random.split(key, 4)

    w1, b1 = init_linear(k1, D_in, H1)
    w2, b2 = init_linear(k2, H1, H2)
    w3, b3 = init_linear(k3, H2, D_out)

    # f32 path, tiny batch (single grid step).
    B = 8
    x = jax.random.normal(kx, (B, D_in), jnp.float32)
    y_ref = reference_forward(x, w1, b1, w2, b2, w3, b3)
    y = jax.block_until_ready(net_forward(x, w1, b1, w2, b2, w3, b3))
    assert y.shape == (B, D_out)
    assert jnp.allclose(y, y_ref, atol=1e-5, rtol=1e-5)

    # f32 path, batch that is NOT a tile multiple: exercises the partial last
    # block (no wrapper pad of x) and a >=2-step grid for v7x sharding.
    B2 = 20
    x2 = jax.random.normal(kx, (B2, D_in), jnp.float32)
    y2_ref = reference_forward(x2, w1, b1, w2, b2, w3, b3)
    y2 = jax.block_until_ready(net_forward(x2, w1, b1, w2, b2, w3, b3))
    assert y2.shape == (B2, D_out)
    assert jnp.allclose(y2, y2_ref, atol=1e-5, rtol=1e-5)

    # bf16 compute path (recommended on v5e/v6e/v7x when HBM-bound): looser tol.
    y_bf16 = jax.block_until_ready(
        net_forward(x, w1, b1, w2, b2, w3, b3, compute_dtype=jnp.bfloat16))
    assert y_bf16.shape == (B, D_out)
    assert jnp.allclose(y_bf16, y_ref, atol=3e-2, rtol=3e-2)

    print("KERNEL_OK")
</pallas_src>

<mosaic_0001>
module attributes {stable_mosaic.version = 11 : i64} {
  func.func @mlp_kernel(%arg0: i32, %arg1: memref<8x32xf32, #tpu.memory_space<vmem>>, %arg2: memref<32x128xf32, #tpu.memory_space<vmem>>, %arg3: memref<1x128xf32, #tpu.memory_space<vmem>>, %arg4: memref<128x128xf32, #tpu.memory_space<vmem>>, %arg5: memref<1x128xf32, #tpu.memory_space<vmem>>, %arg6: memref<128x16xf32, #tpu.memory_space<vmem>>, %arg7: memref<1x16xf32, #tpu.memory_space<vmem>>, %arg8: memref<8x16xf32, #tpu.memory_space<vmem>>) attributes {dimension_semantics = [#tpu.dimension_semantics<parallel>], iteration_bounds = array<i64: 1>, scalar_prefetch = 0 : i64, scratch_operands = 0 : i64, tpu.core_type = #tpu.core_type<tc>, window_params = [{transform_indices = @transform_0, window_bounds = array<i64: 8, 32>}, {pipeline_mode = #tpu.pipeline_mode<synchronous>, transform_indices = @transform_1, window_bounds = array<i64: 32, 128>}, {pipeline_mode = #tpu.pipeline_mode<synchronous>, transform_indices = @transform_2, window_bounds = array<i64: 1, 128>}, {pipeline_mode = #tpu.pipeline_mode<synchronous>, transform_indices = @transform_3, window_bounds = array<i64: 128, 128>}, {pipeline_mode = #tpu.pipeline_mode<synchronous>, transform_indices = @transform_4, window_bounds = array<i64: 1, 128>}, {pipeline_mode = #tpu.pipeline_mode<synchronous>, transform_indices = @transform_5, window_bounds = array<i64: 128, 16>}, {pipeline_mode = #tpu.pipeline_mode<synchronous>, transform_indices = @transform_6, window_bounds = array<i64: 1, 16>}, {transform_indices = @transform_7, window_bounds = array<i64: 8, 16>}]} {
    %c0 = arith.constant 0 : index
    %c0_0 = arith.constant 0 : index
    %0 = vector.load %arg1[%c0, %c0_0] : memref<8x32xf32, #tpu.memory_space<vmem>>, vector<8x32xf32>
    %c0_1 = arith.constant 0 : index
    %c0_2 = arith.constant 0 : index
    %1 = vector.load %arg2[%c0_1, %c0_2] : memref<32x128xf32, #tpu.memory_space<vmem>>, vector<32x128xf32>
    %cst = arith.constant dense<0.000000e+00> : vector<8x128xf32>
    %2 = tpu.matmul %0, %1, %cst {dimension_numbers = #tpu.dot_dimension_numbers<[1], [0], [0], [1], [0, 0, 1, 1], [], []>} : vector<8x32xf32>, vector<32x128xf32>, vector<8x128xf32> -> vector<8x128xf32>
    %c0_3 = arith.constant 0 : index
    %c0_4 = arith.constant 0 : index
    %3 = vector.load %arg3[%c0_3, %c0_4] : memref<1x128xf32, #tpu.memory_space<vmem>>, vector<1x128xf32>
    %4 = vector.broadcast %3 : vector<1x128xf32> to vector<8x128xf32>
    %5 = arith.addf %2, %4 : vector<8x128xf32>
    %6 = arith.negf %5 : vector<8x128xf32>
    %7 = math.exp %6 : vector<8x128xf32>
    %cst_5 = arith.constant 1.000000e+00 : f32
    %8 = vector.broadcast %cst_5 : f32 to vector<8x128xf32>
    %9 = arith.addf %8, %7 : vector<8x128xf32>
    %10 = arith.divf %8, %9 : vector<8x128xf32>
    %c0_6 = arith.constant 0 : index
    %c0_7 = arith.constant 0 : index
    %11 = vector.load %arg4[%c0_6, %c0_7] : memref<128x128xf32, #tpu.memory_space<vmem>>, vector<128x128xf32>
    %cst_8 = arith.constant dense<0.000000e+00> : vector<8x128xf32>
    %12 = tpu.matmul %10, %11, %cst_8 {dimension_numbers = #tpu.dot_dimension_numbers<[1], [0], [0], [1], [0, 0, 1, 1], [], []>} : vector<8x128xf32>, vector<128x128xf32>, vector<8x128xf32> -> vector<8x128xf32>
    %c0_9 = arith.constant 0 : index
    %c0_10 = arith.constant 0 : index
    %13 = vector.load %arg5[%c0_9, %c0_10] : memref<1x128xf32, #tpu.memory_space<vmem>>, vector<1x128xf32>
    %14 = vector.broadcast %13 : vector<1x128xf32> to vector<8x128xf32>
    %15 = arith.addf %12, %14 : vector<8x128xf32>
    %16 = arith.negf %15 : vector<8x128xf32>
    %17 = math.exp %16 : vector<8x128xf32>
    %cst_11 = arith.constant 1.000000e+00 : f32
    %18 = vector.broadcast %cst_11 : f32 to vector<8x128xf32>
    %19 = arith.addf %18, %17 : vector<8x128xf32>
    %20 = arith.divf %18, %19 : vector<8x128xf32>
    %c0_12 = arith.constant 0 : index
    %c0_13 = arith.constant 0 : index
    %21 = vector.load %arg6[%c0_12, %c0_13] : memref<128x16xf32, #tpu.memory_space<vmem>>, vector<128x16xf32>
    %cst_14 = arith.constant dense<0.000000e+00> : vector<8x16xf32>
    %22 = tpu.matmul %20, %21, %cst_14 {dimension_numbers = #tpu.dot_dimension_numbers<[1], [0], [0], [1], [0, 0, 1, 1], [], []>} : vector<8x128xf32>, vector<128x16xf32>, vector<8x16xf32> -> vector<8x16xf32>
    %c0_15 = arith.constant 0 : index
    %c0_16 = arith.constant 0 : index
    %23 = vector.load %arg7[%c0_15, %c0_16] : memref<1x16xf32, #tpu.memory_space<vmem>>, vector<1x16xf32>
    %24 = vector.broadcast %23 : vector<1x16xf32> to vector<8x16xf32>
    %25 = arith.addf %22, %24 : vector<8x16xf32>
    %c0_17 = arith.constant 0 : index
    %c0_18 = arith.constant 0 : index
    %26 = vector.load %arg8[%c0_17, %c0_18] : memref<8x16xf32, #tpu.memory_space<vmem>>, vector<8x16xf32>
    tpu.vector_store %arg8[%c0_17, %c0_18], %25 {strides = array<i32>} : memref<8x16xf32, #tpu.memory_space<vmem>>, vector<8x16xf32>,
    return
  }
  func.func @transform_0(%arg0: i32) -> (i32, i32) {
    %c0_i32 = arith.constant 0 : i32
    %c0_i32_0 = arith.constant 0 : i32
    return %arg0, %c0_i32 : i32, i32
  }
  func.func @transform_1(%arg0: i32) -> (i32, i32) {
    %c0_i32 = arith.constant 0 : i32
    %c0_i32_0 = arith.constant 0 : i32
    %c0_i32_1 = arith.constant 0 : i32
    return %c0_i32, %c0_i32_0 : i32, i32
  }
  func.func @transform_2(%arg0: i32) -> (i32, i32) {
    %c0_i32 = arith.constant 0 : i32
    %c0_i32_0 = arith.constant 0 : i32
    %c0_i32_1 = arith.constant 0 : i32
    return %c0_i32, %c0_i32_0 : i32, i32
  }
  func.func @transform_3(%arg0: i32) -> (i32, i32) {
    %c0_i32 = arith.constant 0 : i32
    %c0_i32_0 = arith.constant 0 : i32
    %c0_i32_1 = arith.constant 0 : i32
    return %c0_i32, %c0_i32_0 : i32, i32
  }
  func.func @transform_4(%arg0: i32) -> (i32, i32) {
    %c0_i32 = arith.constant 0 : i32
    %c0_i32_0 = arith.constant 0 : i32
    %c0_i32_1 = arith.constant 0 : i32
    return %c0_i32, %c0_i32_0 : i32, i32
  }
  func.func @transform_5(%arg0: i32) -> (i32, i32) {
    %c0_i32 = arith.constant 0 : i32
    %c0_i32_0 = arith.constant 0 : i32
    %c0_i32_1 = arith.constant 0 : i32
    return %c0_i32, %c0_i32_0 : i32, i32
  }
  func.func @transform_6(%arg0: i32) -> (i32, i32) {
    %c0_i32 = arith.constant 0 : i32
    %c0_i32_0 = arith.constant 0 : i32
    %c0_i32_1 = arith.constant 0 : i32
    return %c0_i32, %c0_i32_0 : i32, i32
  }
  func.func @transform_7(%arg0: i32) -> (i32, i32) {
    %c0_i32 = arith.constant 0 : i32
    %c0_i32_0 = arith.constant 0 : i32
    return %arg0, %c0_i32 : i32, i32
  }
}

</mosaic_0001>

<llo_original>
// kernel: tpu_custom_call.1
$region0: #{tpu_custom_call.1}
  #allocation0 [shape = 'u32[]', space=smem, size = 0x4, offset = 0x4, fixed_abs, tag = 'smem constant byte address 0x4 - core index']
  #allocation1 [shape = 'u32[144,128]{1,0:T(1,128)}', space=vmem, size = 0x12000, scoped, tag = 'internal scratch']
  %s0 = inlined_call_operand.vmem [shape: f32[8,32], index: 0, kind: input, shape index: {}]
  %s1 = inlined_call_operand.hbm [shape: f32[32,128], index: 1, kind: input, shape index: {}]
  %s2 = inlined_call_operand.vmem [shape: f32[1,128], index: 2, kind: input, shape index: {}]
  %s3 = inlined_call_operand.vmem [shape: f32[128,128], index: 3, kind: input, shape index: {}]
  %s4 = inlined_call_operand.vmem [shape: f32[1,128], index: 4, kind: input, shape index: {}]
  %s5 = inlined_call_operand.vmem [shape: f32[128,16], index: 5, kind: input, shape index: {}]
  %s6 = inlined_call_operand.vmem [shape: f32[1,16], index: 6, kind: input, shape index: {}]
  %s7 = inlined_call_operand.hbm [shape: f32[8,16], index: 7, kind: output, shape index: {}]
  %s8 = sld [smem:[#allocation0]]
  $region42: #{tpu_custom_call.1} parent=0
    _
  %s10 = ssub.s32 1, %s8
  %s11 = scalar_select 0, %s10, %s8
  $region1: #{tpu_custom_call.1} parent=0
    #allocation2 [shape = 'u8[16384]{0}', space=vmem, size = 0x4000, scoped, tag = 'input window, operand 1, single buffered']
    #allocation3 [shape = 's32[1]{0}', space=sflag, size = 0x4, scoped, tag = 'scoped memory for tpu_custom_call.1']
    #allocation4 [shape = 's32[1]{0}', space=sflag, size = 0x4, scoped, tag = 'scoped memory for tpu_custom_call.1']
    #allocation5 [shape = 'u8[4096]{0}', space=vmem, size = 0x1000, scoped, tag = 'output window, operand 0, single buffered']
    %12 = vsyncpa [#allocation3], 0
    %13 = vsyncpa [#allocation4], 0
    // Predicated region
    $region2: #{tpu_custom_call.1} parent=1 // pred_check
      _
    $region3: #{tpu_custom_call.1} parent=1 // pred_check_branch
      %15 = sbr.rel (0) target = $region5
    $region4: #{tpu_custom_call.1} parent=1 // pred_region
      _
    $region5: #{tpu_custom_call.1} parent=1 // pred_fallthru
      _
    // Predicated region
    $region6: #{tpu_custom_call.1} parent=1 // pred_check
      _
    $region7: #{tpu_custom_call.1} parent=1 // pred_check_branch
      %17 = sbr.rel (0) target = $region9
    $region8: #{tpu_custom_call.1} parent=1 // pred_region
      %s19 = ssub.s32 512, 512
      %20 = vsyncadd [#allocation3], %s19
      %s21 = sshll.u32 [#allocation2], 4
      %s22 = int_to_ptr.vmem [resolvable:$true] %s21
      %27 = dma.hbm_to_vmem [thread:$0]  %s1, 512, %s22, [#allocation3], 128, 128, 8
    $region9: #{tpu_custom_call.1} parent=1 // pred_fallthru
      _
    // Predicated region
    $region10: #{tpu_custom_call.1} parent=1 // pred_check
      _
    $region11: #{tpu_custom_call.1} parent=1 // pred_check_branch
      %29 = sbr.rel (0) target = $region13
    $region12: #{tpu_custom_call.1} parent=1 // pred_region
      _
    $region13: #{tpu_custom_call.1} parent=1 // pred_fallthru
      _
    // Predicated region
    $region14: #{tpu_custom_call.1} parent=1 // pred_check
      _
    $region15: #{tpu_custom_call.1} parent=1 // pred_check_branch
      %31 = sbr.rel (0) target = $region17
    $region16: #{tpu_custom_call.1} parent=1 // pred_region
      _
    $region17: #{tpu_custom_call.1} parent=1 // pred_fallthru
      _
    // Predicated region
    $region18: #{tpu_custom_call.1} parent=1 // pred_check
      _
    $region19: #{tpu_custom_call.1} parent=1 // pred_check_branch
      %33 = sbr.rel (0) target = $region21
    $region20: #{tpu_custom_call.1} parent=1 // pred_region
      _
    $region21: #{tpu_custom_call.1} parent=1 // pred_fallthru
      _
    // Predicated region
    $region22: #{tpu_custom_call.1} parent=1 // pred_check
      _
    $region23: #{tpu_custom_call.1} parent=1 // pred_check_branch
      %35 = sbr.rel (0) target = $region25
    $region24: #{tpu_custom_call.1} parent=1 // pred_region
      _
    $region25: #{tpu_custom_call.1} parent=1 // pred_fallthru
      _
    // Predicated region
    $region26: #{tpu_custom_call.1} parent=1 // pred_check
      _
    $region27: #{tpu_custom_call.1} parent=1 // pred_check_branch
      %37 = sbr.rel (0) target = $region29
    $region28: #{tpu_custom_call.1} parent=1 // pred_region
      _
    $region29: #{tpu_custom_call.1} parent=1 // pred_fallthru
      _
    // Predicated region
    $region30: #{tpu_custom_call.1} parent=1 // pred_check
      _
    $region31: #{tpu_custom_call.1} parent=1 // pred_check_branch
      %39 = sbr.rel (0) target = $region33
    $region32: #{tpu_custom_call.1} parent=1 // pred_region
      %40 = dma.done [#allocation3], 512
    $region33: #{tpu_custom_call.1} parent=1 // pred_fallthru
      _
    %v41 = vld [vmem:[%s0] sm:$0xff]
    %v42 = vld [vmem:[#allocation2] sm:$0xff]
    %v43 = vld [vmem:[#allocation2 + $0x8] sm:$0xff]
    %v44 = vld [vmem:[#allocation2 + $0x10] sm:$0xff]
    %v45 = vld [vmem:[#allocation2 + $0x18] sm:$0xff]
    %v46 = vld [vmem:[%s2] sm:$0x1]
    %v48 = vlaneseq
    %v49 = vshrl.u32 %v48, 7
    %v50 = vsub.s32 0, %v49
    %v51 = vrot.slane %v46, %v50
    %vm53 = vcmask 261120
    %v55 = vsel %vm53, %v41, 0
    %57 = vmatprep.subr.mxu0 0.0
    %58 = vmatpush1.msra.mxu0 %v42
    %59 = vmatprep.subr.mxu0 0.0
    %60 = vmatpush1.msra.mxu0 %v43
    %61 = vmatprep.subr.mxu0 0.0
    %62 = vmatpush1.msra.mxu0 %v44
    %63 = vmatprep.subr.mxu0 0.0
    %64 = vmatpush1.msra.mxu0 %v45
    %65 = vmatprep.subr.mxu0 0.0
    %66 = vmatpush1.msra.mxu0 0.0
    %67 = vmatprep.subr.mxu0 0.0
    %68 = vmatpush1.msra.mxu0 0.0
    %69 = vmatprep.subr.mxu0 0.0
    %70 = vmatpush1.msra.mxu0 0.0
    %71 = vmatprep.subr.mxu0 0.0
    %72 = vmatpush1.msra.mxu0 0.0
    %73 = vmatprep.subr.mxu0 0.0
    %74 = vmatpush1.msra.mxu0 0.0
    %75 = vmatprep.subr.mxu0 0.0
    %76 = vmatpush1.msra.mxu0 0.0
    %77 = vmatprep.subr.mxu0 0.0
    %78 = vmatpush1.msra.mxu0 0.0
    %79 = vmatprep.subr.mxu0 0.0
    %80 = vmatpush1.msra.mxu0 0.0
    %81 = vmatprep.subr.mxu0 0.0
    %82 = vmatpush1.msra.mxu0 0.0
    %83 = vmatprep.subr.mxu0 0.0
    %84 = vmatpush1.msra.mxu0 0.0
    %85 = vmatprep.subr.mxu0 0.0
    %86 = vmatpush1.msra.mxu0 0.0
    %87 = vmatprep.subr.mxu0 0.0
    %88 = vmatpush1.msra.mxu0 0.0
    %89 = vmatprep.subr.mxu0 0.0
    %90 = vmatpush1.msra.mxu0 0.0
    %91 = vmatprep.subr.mxu0 0.0
    %92 = vmatpush1.msra.mxu0 0.0
    %93 = vmatprep.subr.mxu0 0.0
    %94 = vmatpush1.msra.mxu0 0.0
    %95 = vmatprep.subr.mxu0 0.0
    %96 = vmatpush1.msra.mxu0 0.0
    %97 = vmatprep.subr.mxu0 0.0
    %98 = vmatpush1.msra.mxu0 0.0
    %99 = vmatprep.subr.mxu0 0.0
    %100 = vmatpush1.msra.mxu0 0.0
    %101 = vmatprep.subr.mxu0 0.0
    %102 = vmatpush1.msra.mxu0 0.0
    %103 = vmatprep.subr.mxu0 0.0
    %104 = vmatpush1.msra.mxu0 0.0
    %105 = vmatprep.subr.mxu0 0.0
    %106 = vmatpush1.msra.mxu0 0.0
    %107 = vmatprep.subr.mxu0 0.0
    %108 = vmatpush1.msra.mxu0 0.0
    %109 = vmatprep.subr.mxu0 0.0
    %110 = vmatpush1.msra.mxu0 0.0
    %111 = vmatprep.subr.mxu0 0.0
    %112 = vmatpush1.msra.mxu0 0.0
    %113 = vmatprep.subr.mxu0 0.0
    %114 = vmatpush1.msra.mxu0 0.0
    %115 = vmatprep.subr.mxu0 0.0
    %116 = vmatpush1.msra.mxu0 0.0
    %117 = vmatprep.subr.mxu0 0.0
    %118 = vmatpush1.msra.mxu0 0.0
    %119 = vmatprep.subr.mxu0 0.0
    %120 = vmatpush1.msra.mxu0 0.0
    %121 = vmatprep.mubr.f32.mxu0 0.0
    %122 = vmatmul.mubr.f32.gmra.mrb[0].mxu0 %v55
    %v123 = vpop.f32.mrb[0].mxu0
    %v124 = vadd.f32 %v51, %v123
    %v125 = vpop.f32.mrb[0].mxu0
    %126 = vdwg.mxu0
    %v127 = vxor.u32 %v124, 2147483648
    %v128 = vmul.f32 %v127, 1.442695
    %v129 = vpow.pop %v128
    %v130 = vadd.f32 %v129, 1.0
    %v131 = vrcp.pop %v130
    %v132 = vmul.f32 1.0, %v131
    %v133 = vld [vmem:[%s3] sm:$0xff]
    %v134 = vld [vmem:[%s3 + $0x8] sm:$0xff]
    %v135 = vld [vmem:[%s3 + $0x10] sm:$0xff]
    %v136 = vld [vmem:[%s3 + $0x18] sm:$0xff]
    %v137 = vld [vmem:[%s3 + $0x20] sm:$0xff]
    %v138 = vld [vmem:[%s3 + $0x28] sm:$0xff]
    %v139 = vld [vmem:[%s3 + $0x30] sm:$0xff]
    %v140 = vld [vmem:[%s3 + $0x38] sm:$0xff]
    %v141 = vld [vmem:[%s3 + $0x40] sm:$0xff]
    %v142 = vld [vmem:[%s3 + $0x48] sm:$0xff]
    %v143 = vld [vmem:[%s3 + $0x50] sm:$0xff]
    %v144 = vld [vmem:[%s3 + $0x58] sm:$0xff]
    %v145 = vld [vmem:[%s3 + $0x60] sm:$0xff]
    %v146 = vld [vmem:[%s3 + $0x68] sm:$0xff]
    %v147 = vld [vmem:[%s3 + $0x70] sm:$0xff]
    %v148 = vld [vmem:[%s3 + $0x78] sm:$0xff]
    %v149 = vld [vmem:[%s4] sm:$0x1]
    %v151 = vlaneseq
    %v152 = vshrl.u32 %v151, 7
    %v153 = vsub.s32 0, %v152
    %v154 = vrot.slane %v149, %v153
    %156 = vmatprep.subr.mxu0 0.0
    %157 = vmatpush1.msra.mxu0 %v133
    %158 = vmatprep.subr.mxu0 0.0
    %159 = vmatpush1.msra.mxu0 %v134
    %160 = vmatprep.subr.mxu0 0.0
    %161 = vmatpush1.msra.mxu0 %v135
    %162 = vmatprep.subr.mxu0 0.0
    %163 = vmatpush1.msra.mxu0 %v136
    %164 = vmatprep.subr.mxu0 0.0
    %165 = vmatpush1.msra.mxu0 %v137
    %166 = vmatprep.subr.mxu0 0.0
    %167 = vmatpush1.msra.mxu0 %v138
    %168 = vmatprep.subr.mxu0 0.0
    %169 = vmatpush1.msra.mxu0 %v139
    %170 = vmatprep.subr.mxu0 0.0
    %171 = vmatpush1.msra.mxu0 %v140
    %172 = vmatprep.subr.mxu0 0.0
    %173 = vmatpush1.msra.mxu0 %v141
    %174 = vmatprep.subr.mxu0 0.0
    %175 = vmatpush1.msra.mxu0 %v142
    %176 = vmatprep.subr.mxu0 0.0
    %177 = vmatpush1.msra.mxu0 %v143
    %178 = vmatprep.subr.mxu0 0.0
    %179 = vmatpush1.msra.mxu0 %v144
    %180 = vmatprep.subr.mxu0 0.0
    %181 = vmatpush1.msra.mxu0 %v145
    %182 = vmatprep.subr.mxu0 0.0
    %183 = vmatpush1.msra.mxu0 %v146
    %184 = vmatprep.subr.mxu0 0.0
    %185 = vmatpush1.msra.mxu0 %v147
    %186 = vmatprep.subr.mxu0 0.0
    %187 = vmatpush1.msra.mxu0 %v148
    %188 = vmatprep.subr.mxu0 0.0
    %189 = vmatpush1.msra.mxu0 0.0
    %190 = vmatprep.subr.mxu0 0.0
    %191 = vmatpush1.msra.mxu0 0.0
    %192 = vmatprep.subr.mxu0 0.0
    %193 = vmatpush1.msra.mxu0 0.0
    %194 = vmatprep.subr.mxu0 0.0
    %195 = vmatpush1.msra.mxu0 0.0
    %196 = vmatprep.subr.mxu0 0.0
    %197 = vmatpush1.msra.mxu0 0.0
    %198 = vmatprep.subr.mxu0 0.0
    %199 = vmatpush1.msra.mxu0 0.0
    %200 = vmatprep.subr.mxu0 0.0
    %201 = vmatpush1.msra.mxu0 0.0
    %202 = vmatprep.subr.mxu0 0.0
    %203 = vmatpush1.msra.mxu0 0.0
    %204 = vmatprep.subr.mxu0 0.0
    %205 = vmatpush1.msra.mxu0 0.0
    %206 = vmatprep.subr.mxu0 0.0
    %207 = vmatpush1.msra.mxu0 0.0
    %208 = vmatprep.subr.mxu0 0.0
    %209 = vmatpush1.msra.mxu0 0.0
    %210 = vmatprep.subr.mxu0 0.0
    %211 = vmatpush1.msra.mxu0 0.0
    %212 = vmatprep.subr.mxu0 0.0
    %213 = vmatpush1.msra.mxu0 0.0
    %214 = vmatprep.subr.mxu0 0.0
    %215 = vmatpush1.msra.mxu0 0.0
    %216 = vmatprep.subr.mxu0 0.0
    %217 = vmatpush1.msra.mxu0 0.0
    %218 = vmatprep.subr.mxu0 0.0
    %219 = vmatpush1.msra.mxu0 0.0
    %220 = vmatprep.mubr.f32.mxu0 0.0
    %221 = vmatmul.mubr.f32.gmra.mrb[0].mxu0 %v132
    %v222 = vpop.f32.mrb[0].mxu0
    %v223 = vadd.f32 %v154, %v222
    %v224 = vpop.f32.mrb[0].mxu0
    %225 = vdwg.mxu0
    %v226 = vxor.u32 %v223, 2147483648
    %v227 = vmul.f32 %v226, 1.442695
    %v228 = vpow.pop %v227
    %v229 = vadd.f32 %v228, 1.0
    %v230 = vrcp.pop %v229
    %v231 = vmul.f32 1.0, %v230
    %v232 = vld [vmem:[%s5] sm:$0xff]
    %v233 = vld [vmem:[%s5 + $0x8] sm:$0xff]
    %v234 = vld [vmem:[%s5 + $0x10] sm:$0xff]
    %v235 = vld [vmem:[%s5 + $0x18] sm:$0xff]
    %v236 = vld [vmem:[%s5 + $0x20] sm:$0xff]
    %v237 = vld [vmem:[%s5 + $0x28] sm:$0xff]
    %v238 = vld [vmem:[%s5 + $0x30] sm:$0xff]
    %v239 = vld [vmem:[%s5 + $0x38] sm:$0xff]
    %v240 = vld [vmem:[%s5 + $0x40] sm:$0xff]
    %v241 = vld [vmem:[%s5 + $0x48] sm:$0xff]
    %v242 = vld [vmem:[%s5 + $0x50] sm:$0xff]
    %v243 = vld [vmem:[%s5 + $0x58] sm:$0xff]
    %v244 = vld [vmem:[%s5 + $0x60] sm:$0xff]
    %v245 = vld [vmem:[%s5 + $0x68] sm:$0xff]
    %v246 = vld [vmem:[%s5 + $0x70] sm:$0xff]
    %v247 = vld [vmem:[%s5 + $0x78] sm:$0xff]
    %v248 = vld [vmem:[%s6] sm:$0x1]
    %v250 = vlaneseq
    %v251 = vshrl.u32 %v250, 7
    %v252 = vsub.s32 0, %v251
    %v253 = vrot.slane %v248, %v252
    %255 = vmatprep.subr.mxu0 0.0
    %256 = vmatpush1.msra.mxu0 %v232
    %257 = vmatprep.subr.mxu0 0.0
    %258 = vmatpush1.msra.mxu0 %v233
    %259 = vmatprep.subr.mxu0 0.0
    %260 = vmatpush1.msra.mxu0 %v234
    %261 = vmatprep.subr.mxu0 0.0
    %262 = vmatpush1.msra.mxu0 %v235
    %263 = vmatprep.subr.mxu0 0.0
    %264 = vmatpush1.msra.mxu0 %v236
    %265 = vmatprep.subr.mxu0 0.0
    %266 = vmatpush1.msra.mxu0 %v237
    %267 = vmatprep.subr.mxu0 0.0
    %268 = vmatpush1.msra.mxu0 %v238
    %269 = vmatprep.subr.mxu0 0.0
    %270 = vmatpush1.msra.mxu0 %v239
    %271 = vmatprep.subr.mxu0 0.0
    %272 = vmatpush1.msra.mxu0 %v240
    %273 = vmatprep.subr.mxu0 0.0
    %274 = vmatpush1.msra.mxu0 %v241
    %275 = vmatprep.subr.mxu0 0.0
    %276 = vmatpush1.msra.mxu0 %v242
    %277 = vmatprep.subr.mxu0 0.0
    %278 = vmatpush1.msra.mxu0 %v243
    %279 = vmatprep.subr.mxu0 0.0
    %280 = vmatpush1.msra.mxu0 %v244
    %281 = vmatprep.subr.mxu0 0.0
    %282 = vmatpush1.msra.mxu0 %v245
    %283 = vmatprep.subr.mxu0 0.0
    %284 = vmatpush1.msra.mxu0 %v246
    %285 = vmatprep.subr.mxu0 0.0
    %286 = vmatpush1.msra.mxu0 %v247
    %287 = vmatprep.subr.mxu0 0.0
    %288 = vmatpush1.msra.mxu0 0.0
    %289 = vmatprep.subr.mxu0 0.0
    %290 = vmatpush1.msra.mxu0 0.0
    %291 = vmatprep.subr.mxu0 0.0
    %292 = vmatpush1.msra.mxu0 0.0
    %293 = vmatprep.subr.mxu0 0.0
    %294 = vmatpush1.msra.mxu0 0.0
    %295 = vmatprep.subr.mxu0 0.0
    %296 = vmatpush1.msra.mxu0 0.0
    %297 = vmatprep.subr.mxu0 0.0
    %298 = vmatpush1.msra.mxu0 0.0
    %299 = vmatprep.subr.mxu0 0.0
    %300 = vmatpush1.msra.mxu0 0.0
    %301 = vmatprep.subr.mxu0 0.0
    %302 = vmatpush1.msra.mxu0 0.0
    %303 = vmatprep.subr.mxu0 0.0
    %304 = vmatpush1.msra.mxu0 0.0
    %305 = vmatprep.subr.mxu0 0.0
    %306 = vmatpush1.msra.mxu0 0.0
    %307 = vmatprep.subr.mxu0 0.0
    %308 = vmatpush1.msra.mxu0 0.0
    %309 = vmatprep.subr.mxu0 0.0
    %310 = vmatpush1.msra.mxu0 0.0
    %311 = vmatprep.subr.mxu0 0.0
    %312 = vmatpush1.msra.mxu0 0.0
    %313 = vmatprep.subr.mxu0 0.0
    %314 = vmatpush1.msra.mxu0 0.0
    %315 = vmatprep.subr.mxu0 0.0
    %316 = vmatpush1.msra.mxu0 0.0
    %317 = vmatprep.subr.mxu0 0.0
    %318 = vmatpush1.msra.mxu0 0.0
    %319 = vmatprep.mubr.f32.mxu0 0.0
    %320 = vmatmul.mubr.f32.gmra.mrb[0].mxu0 %v231
    %v321 = vpop.f32.mrb[0].mxu0
    %v322 = vadd.f32 %v253, %v321
    %v323 = vpop.f32.mrb[0].mxu0
    %324 = vdwg.mxu0
    %vm325 = vcmask 130048
    %326 = vst.msk [vmem:[#allocation5] sm:$0xff] %vm325, %v322
    // Predicated region
    $region34: #{tpu_custom_call.1} parent=1 // pred_check
      _
    $region35: #{tpu_custom_call.1} parent=1 // pred_check_branch
      %328 = sbr.rel (0) target = $region37
    $region36: #{tpu_custom_call.1} parent=1 // pred_region
      %s330 = ssub.s32 128, 128
      %331 = vsyncadd [#allocation4], %s330
      %s333 = sshll.u32 [#allocation5], 4
      %s334 = int_to_ptr.vmem [resolvable:$true] %s333
      %336 = dma.vmem_to_hbm [thread:$0]  %s334, 128, %s7, [#allocation4]
    $region37: #{tpu_custom_call.1} parent=1 // pred_fallthru
      _
    // Predicated region
    $region38: #{tpu_custom_call.1} parent=1 // pred_check
      _
    $region39: #{tpu_custom_call.1} parent=1 // pred_check_branch
      %338 = sbr.rel (0) target = $region41
    $region40: #{tpu_custom_call.1} parent=1 // pred_region
      %339 = dma.done [#allocation4], 128
    $region41: #{tpu_custom_call.1} parent=1 // pred_fallthru
      _
    %340 = vsyncpa [#allocation3], 1
    %341 = vsyncpa [#allocation4], 1

</llo_original>
